<compile_context>
chip_gen: v7x
topology: tpu7x:2x2x1
jax: 0.10.0
libtpu: 0.0.40
codegen_flags: <defaults>
</compile_context>

<pallas_src>
import functools

import jax
import jax.numpy as jnp
from jax import lax
from jax.experimental import pallas as pl
from jax.experimental.pallas import tpu as pltpu


def _round_up(x, m):
    return (x + m - 1) // m * m


def _tcn_kernel(K_taps, shift, head, Lx, TV, count, eps,
                x_ref, w_ref, g_ref, p_ref, o_ref, xs_ref):
    """Per-sample temporal conv + GroupNorm + affine.

    x_ref : (C_tap, Lx)             f32  raw flattened sample (no temporal pad)
    w_ref : (K_taps, C_out, C_tap)  bf16 conv taps (resident)
    g_ref : (C_out, C_out)          f32  group-pool 0/1 mask (resident)
    p_ref : (C_out, 3)              f32  [bias, gamma, beta] (resident)
    o_ref : (C_out, TV)             out  dense per-sample output row
    xs_ref: (C_tap, L_scr)          bf16 zero-padded conv operand (scratch)
    """
    C_tap, L_scr = xs_ref.shape
    cdt = xs_ref.dtype

    # --- build the temporally zero-padded bf16 operand in VMEM ----------------
    # Pad regions are re-zeroed every step (tiny) so the kernel stays correct
    # under any megacore sharding of the N axis.
    if head > 0:
        xs_ref[:, :head] = jnp.zeros((C_tap, head), cdt)
    tail = L_scr - (head + Lx)
    if tail > 0:
        xs_ref[:, head + Lx:] = jnp.zeros((C_tap, tail), cdt)
    # f32 -> bf16 cast happens here, so the wrapper never writes an extra HBM
    # copy of the input.
    xs_ref[:, head:head + Lx] = x_ref[...].astype(cdt)

    # --- conv (without bias): K shifted (C_out,C_tap)@(C_tap,TV) MXU matmuls --
    # NOTE: tap windows start at lane offsets k*shift (not 128-aligned); this is
    # hidden behind HBM today.  TODO(synk): on v7x consider staging the K taps
    # into one (K*C_tap, TV) scratch and doing a single MRB-accumulated dot;
    # keep the per-tap loop on v5e (single vst slot).
    acc = None
    for k in range(K_taps):
        off = k * shift                               # static Python int
        xk = xs_ref[:, off:off + TV]                  # (C_tap, TV) bf16
        yk = jnp.dot(w_ref[k], xk, preferred_element_type=jnp.float32)
        acc = yk if acc is None else acc + yk
    y0 = acc                                          # (C_out, TV) f32

    b = p_ref[:, 0:1]
    gamma = p_ref[:, 1:2]
    beta = p_ref[:, 2:3]

    # --- GroupNorm stats: per-channel sums first, then group-pool with the ----
    # --- precomputed (C_out x C_out) mask matmul (no per-step iota build). ----
    s1 = jnp.sum(y0, axis=-1, keepdims=True)          # (C_out, 1)
    s2 = jnp.sum(y0 * y0, axis=-1, keepdims=True)     # (C_out, 1)
    # Fold the per-channel conv bias in analytically:
    #   sum(y0+b) = s1 + TV*b ;  sum((y0+b)^2) = s2 + 2*b*s1 + TV*b^2
    t1 = s1 + TV * b
    t2 = s2 + 2.0 * b * s1 + TV * (b * b)
    g1 = jnp.dot(g_ref[...], t1, preferred_element_type=jnp.float32)  # (C_out,1)
    g2 = jnp.dot(g_ref[...], t2, preferred_element_type=jnp.float32)  # (C_out,1)

    inv_count = 1.0 / count
    mean = g1 * inv_count
    # E[x^2]-E[x]^2 in f32; clamped >= 0 (cancellation is benign at GN scale).
    var = jnp.maximum(g2 * inv_count - mean * mean, 0.0)
    inv_std = lax.rsqrt(var + eps)

    # --- fused affine epilogue: ((y0+b)-mean)*inv_std*gamma + beta = y0*a + c --
    a = inv_std * gamma
    c = (b - mean) * a + beta
    # Dropout(p=0) -> identity.
    o_ref[...] = (y0 * a + c).astype(o_ref.dtype)


def unit_tcn_pallas(x, weight, bias, gamma, beta, *, kernel_size=9, stride=1,
                    dilation=1, group_size=8, eps=1e-5,
                    compute_dtype=jnp.bfloat16, out_dtype=jnp.float32):
    """x: (N, C_in, T, V) f32.  weight: (C_out, C_in, K, 1).
    Returns (N, C_out, T_out, V) in out_dtype (default f32 = module semantics;
    pass bf16 to halve output HBM traffic when downstream accepts it)."""
    N, C_in, T, V = x.shape
    C_out = weight.shape[0]
    K = kernel_size
    pad = (K + (K - 1) * (dilation - 1) - 1) // 2
    T_out = (T + 2 * pad - dilation * (K - 1) - 1) // stride + 1
    TV = T_out * V
    G = group_size
    assert C_out % G == 0
    Cg = C_out // G

    if stride == 1:
        # Direct path: no im2col, no wrapper-side pad/cast.  (T, V) is flattened
        # onto the lane axis with a copy-free reshape; padding + bf16 cast happen
        # inside the kernel, in VMEM.
        K_taps = K
        shift = dilation * V
        head = pad * V
        Lx = T * V
        x_in = x.reshape(N, C_in, Lx)
        # taps: w_in[k, o, c] = weight[o, c, k, 0]
        w_in = jnp.transpose(weight[:, :, :, 0], (2, 0, 1)).astype(compute_dtype)
    else:
        # TODO(synk): stride>1 falls back to a wrapper-side im2col (~K x input
        # read amplification); bring it in-kernel via strided reads into the
        # scratch if strided layers become hot.
        K_taps = 1
        shift = 0
        head = 0
        x_pd = jnp.pad(x, ((0, 0), (0, 0), (pad, pad), (0, 0)))
        cols = []
        for k in range(K):
            start = k * dilation
            sl = lax.slice(x_pd, (0, 0, start, 0),
                           (N, C_in, start + stride * (T_out - 1) + 1, V),
                           (1, 1, stride, 1))
            cols.append(sl)
        x_in = jnp.stack(cols, axis=1).reshape(N, K * C_in, TV)
        Lx = TV
        w_in = jnp.transpose(weight[:, :, :, 0], (0, 2, 1)).reshape(1, C_out, K * C_in)
        w_in = w_in.astype(compute_dtype)

    C_tap = x_in.shape[1]
    # Scratch length: must cover the farthest tap window and the raw data slab.
    L_scr = _round_up(max((K_taps - 1) * shift + TV, head + Lx), 128)

    params = jnp.stack([bias, gamma, beta], axis=1).astype(jnp.float32)  # (C_out, 3)
    grp = jnp.arange(C_out) // Cg
    gmat = (grp[:, None] == grp[None, :]).astype(jnp.float32)            # (C_out, C_out)
    count = float(Cg * TV)

    kernel = functools.partial(_tcn_kernel, K_taps, shift, head, Lx, TV, count, eps)

    out_bytes = jnp.dtype(out_dtype).itemsize
    need = (2 * C_tap * Lx * 4                    # x block, f32, double-buffered
            + 2 * C_out * TV * out_bytes          # out block, double-buffered
            + 2 * K_taps * C_out * C_tap * 2      # weights (bf16)
            + 2 * C_out * C_out * 4               # group mask
            + 2 * C_out * 3 * 4                   # params
            + C_tap * L_scr * 2                   # padded bf16 scratch
            + 4 * C_out * TV * 4)                 # in-kernel f32 intermediates
    # Cap below v7x's 64 MiB physical VMEM; floor leaves room for compiler scratch.
    vmem_limit = int(min(max(int(need * 1.3) + (1 << 20), 16 << 20), 48 << 20))

    # TODO(synk): for v7x add a group-aligned channel grid axis ("parallel") so
    # both TensorCores are busy at N=1 and very large C_out*TV samples tile.
    out = pl.pallas_call(
        kernel,
        out_shape=jax.ShapeDtypeStruct((N, C_out, TV), out_dtype),
        grid_spec=pltpu.PrefetchScalarGridSpec(
            num_scalar_prefetch=0,
            grid=(N,),
            in_specs=[
                pl.BlockSpec((None, C_tap, Lx), lambda n: (n, 0, 0)),       # x per sample (f32)
                pl.BlockSpec((K_taps, C_out, C_tap), lambda n: (0, 0, 0)),  # conv taps (resident)
                pl.BlockSpec((C_out, C_out), lambda n: (0, 0)),             # group mask (resident)
                pl.BlockSpec((C_out, 3), lambda n: (0, 0)),                 # bias|gamma|beta
            ],
            out_specs=pl.BlockSpec((None, C_out, TV), lambda n: (n, 0, 0)),
            scratch_shapes=[pltpu.VMEM((C_tap, L_scr), compute_dtype)],
        ),
        compiler_params=pltpu.CompilerParams(
            dimension_semantics=("parallel",),
            vmem_limit_bytes=vmem_limit),
    )(x_in, w_in, gmat, params)

    # Contiguous reshape only (no slice): copy-free at the module boundary.
    return out.reshape(N, C_out, T_out, V)


def unit_tcn_reference(x, weight, bias, gamma, beta, *, kernel_size=9, stride=1,
                       dilation=1, group_size=8, eps=1e-5):
    """Pure-JAX f32 reference matching the PyTorch module."""
    K = kernel_size
    pad = (K + (K - 1) * (dilation - 1) - 1) // 2
    y = lax.conv_general_dilated(
        x, weight, window_strides=(stride, 1),
        padding=[(pad, pad), (0, 0)], rhs_dilation=(dilation, 1),
        dimension_numbers=("NCHW", "OIHW", "NCHW"))
    y = y + bias.reshape(1, -1, 1, 1)
    N, C, T, V = y.shape
    G = group_size
    yg = y.reshape(N, G, C // G, T, V)
    mu = jnp.mean(yg, axis=(2, 3, 4), keepdims=True)
    var = jnp.mean((yg - mu) ** 2, axis=(2, 3, 4), keepdims=True)
    yn = ((yg - mu) / jnp.sqrt(var + eps)).reshape(N, C, T, V)
    return yn * gamma.reshape(1, -1, 1, 1) + beta.reshape(1, -1, 1, 1)


def _check(x, weight, bias, gamma, beta, *, K, stride, dilation, group_size):
    out = unit_tcn_pallas(x, weight, bias, gamma, beta,
                          kernel_size=K, stride=stride, dilation=dilation,
                          group_size=group_size)
    out = jax.block_until_ready(out)

    # Tight check: reference with conv operands rounded to bf16 (what the MXU
    # actually consumes) -- validates the kernel math itself.
    xq = x.astype(jnp.bfloat16).astype(jnp.float32)
    wq = weight.astype(jnp.bfloat16).astype(jnp.float32)
    ref_q = unit_tcn_reference(xq, wq, bias, gamma, beta,
                               kernel_size=K, stride=stride, dilation=dilation,
                               group_size=group_size)
    # Loose check: full-f32 module semantics (tolerance covers bf16 operands).
    ref = unit_tcn_reference(x, weight, bias, gamma, beta,
                             kernel_size=K, stride=stride, dilation=dilation,
                             group_size=group_size)

    assert out.shape == ref.shape, (out.shape, ref.shape)
    assert jnp.allclose(out, ref_q, atol=1e-3, rtol=1e-3), \
        float(jnp.max(jnp.abs(out - ref_q)))
    assert jnp.allclose(out, ref, atol=3e-2, rtol=3e-2), \
        float(jnp.max(jnp.abs(out - ref)))


if __name__ == "__main__":
    # small shapes: batch=2, in_channels=8, out_channels=16, T=16, V=8
    N, C_in, C_out, T, V = 2, 8, 16, 16, 8
    K, dilation, group_size = 9, 1, 8

    key = jax.random.PRNGKey(0)
    kx, kw, kb, kg, kbt = jax.random.split(key, 5)

    x = jax.random.normal(kx, (N, C_in, T, V), dtype=jnp.float32)
    fan_in = C_in * K
    bound = 1.0 / (fan_in ** 0.5)
    weight = jax.random.uniform(kw, (C_out, C_in, K, 1), minval=-bound, maxval=bound,
                                dtype=jnp.float32)
    bias = jax.random.uniform(kb, (C_out,), minval=-bound, maxval=bound, dtype=jnp.float32)
    gamma = 1.0 + 0.1 * jax.random.normal(kg, (C_out,), dtype=jnp.float32)
    beta = 0.1 * jax.random.normal(kbt, (C_out,), dtype=jnp.float32)

    # stride == 1 (direct, no-im2col path)
    _check(x, weight, bias, gamma, beta, K=K, stride=1, dilation=dilation,
           group_size=group_size)
    # stride == 2 (im2col fallback path)
    _check(x, weight, bias, gamma, beta, K=K, stride=2, dilation=dilation,
           group_size=group_size)

    print("KERNEL_OK")
</pallas_src>

<mosaic_0001>
module attributes {stable_mosaic.version = 11 : i64} {
  func.func @_tcn_kernel(%arg0: i32, %arg1: memref<1x8x128xf32, #tpu.memory_space<vmem>>, %arg2: memref<9x16x8xbf16, #tpu.memory_space<vmem>>, %arg3: memref<16x16xf32, #tpu.memory_space<vmem>>, %arg4: memref<16x3xf32, #tpu.memory_space<vmem>>, %arg5: memref<1x16x128xf32, #tpu.memory_space<vmem>>, %arg6: memref<8x256xbf16, #tpu.memory_space<vmem>>) attributes {dimension_semantics = [#tpu.dimension_semantics<parallel>], iteration_bounds = array<i64: 2>, scalar_prefetch = 0 : i64, scratch_operands = 1 : i64, tpu.core_type = #tpu.core_type<tc>, window_params = [{transform_indices = @transform_0, window_bounds = array<i64: 1, 8, 128>}, {pipeline_mode = #tpu.pipeline_mode<synchronous>, transform_indices = @transform_1, window_bounds = array<i64: 9, 16, 8>}, {pipeline_mode = #tpu.pipeline_mode<synchronous>, transform_indices = @transform_2, window_bounds = array<i64: 16, 16>}, {pipeline_mode = #tpu.pipeline_mode<synchronous>, transform_indices = @transform_3, window_bounds = array<i64: 16, 3>}, {transform_indices = @transform_4, window_bounds = array<i64: 1, 16, 128>}]} {
    %cst = arith.constant 0.000000e+00 : bf16
    %0 = vector.broadcast %cst : bf16 to vector<8x32xbf16>
    %c0 = arith.constant 0 : index
    %c0_0 = arith.constant 0 : index
    %1 = vector.load %arg6[%c0, %c0_0] : memref<8x256xbf16, #tpu.memory_space<vmem>>, vector<8x32xbf16>
    tpu.vector_store %arg6[%c0, %c0_0], %0 {strides = array<i32>} : memref<8x256xbf16, #tpu.memory_space<vmem>>, vector<8x32xbf16>,
    %cst_1 = arith.constant 0.000000e+00 : bf16
    %2 = vector.broadcast %cst_1 : bf16 to vector<8x96xbf16>
    %c0_2 = arith.constant 0 : index
    %c160 = arith.constant 160 : index
    %3 = vector.load %arg6[%c0_2, %c160] : memref<8x256xbf16, #tpu.memory_space<vmem>>, vector<8x96xbf16>
    tpu.vector_store %arg6[%c0_2, %c160], %2 {strides = array<i32>} : memref<8x256xbf16, #tpu.memory_space<vmem>>, vector<8x96xbf16>,
    %c0_3 = arith.constant 0 : index
    %c0_4 = arith.constant 0 : index
    %c0_5 = arith.constant 0 : index
    %4 = vector.load %arg1[%c0_3, %c0_4, %c0_5] : memref<1x8x128xf32, #tpu.memory_space<vmem>>, vector<1x8x128xf32>
    %5 = vector.shape_cast %4 : vector<1x8x128xf32> to vector<8x128xf32>
    %6 = arith.truncf %5 : vector<8x128xf32> to vector<8x128xbf16>
    %c0_6 = arith.constant 0 : index
    %c32 = arith.constant 32 : index
    %7 = vector.load %arg6[%c0_6, %c32] : memref<8x256xbf16, #tpu.memory_space<vmem>>, vector<8x128xbf16>
    tpu.vector_store %arg6[%c0_6, %c32], %6 {strides = array<i32>} : memref<8x256xbf16, #tpu.memory_space<vmem>>, vector<8x128xbf16>,
    %c0_7 = arith.constant 0 : index
    %c0_8 = arith.constant 0 : index
    %8 = vector.load %arg6[%c0_7, %c0_8] : memref<8x256xbf16, #tpu.memory_space<vmem>>, vector<8x128xbf16>
    %c0_9 = arith.constant 0 : index
    %c0_10 = arith.constant 0 : index
    %c0_11 = arith.constant 0 : index
    %9 = vector.load %arg2[%c0_9, %c0_10, %c0_11] : memref<9x16x8xbf16, #tpu.memory_space<vmem>>, vector<1x16x8xbf16>
    %10 = vector.shape_cast %9 : vector<1x16x8xbf16> to vector<16x8xbf16>
    %cst_12 = arith.constant dense<0.000000e+00> : vector<16x128xf32>
    %11 = tpu.matmul %10, %8, %cst_12 {dimension_numbers = #tpu.dot_dimension_numbers<[1], [0], [0], [1], [0, 0, 1, 1], [], []>} : vector<16x8xbf16>, vector<8x128xbf16>, vector<16x128xf32> -> vector<16x128xf32>
    %c0_13 = arith.constant 0 : index
    %c8 = arith.constant 8 : index
    %12 = vector.load %arg6[%c0_13, %c8] : memref<8x256xbf16, #tpu.memory_space<vmem>>, vector<8x128xbf16>
    %c1 = arith.constant 1 : index
    %c0_14 = arith.constant 0 : index
    %c0_15 = arith.constant 0 : index
    %13 = vector.load %arg2[%c1, %c0_14, %c0_15] : memref<9x16x8xbf16, #tpu.memory_space<vmem>>, vector<1x16x8xbf16>
    %14 = vector.shape_cast %13 : vector<1x16x8xbf16> to vector<16x8xbf16>
    %cst_16 = arith.constant dense<0.000000e+00> : vector<16x128xf32>
    %15 = tpu.matmul %14, %12, %cst_16 {dimension_numbers = #tpu.dot_dimension_numbers<[1], [0], [0], [1], [0, 0, 1, 1], [], []>} : vector<16x8xbf16>, vector<8x128xbf16>, vector<16x128xf32> -> vector<16x128xf32>
    %16 = arith.addf %11, %15 : vector<16x128xf32>
    %c0_17 = arith.constant 0 : index
    %c16 = arith.constant 16 : index
    %17 = vector.load %arg6[%c0_17, %c16] : memref<8x256xbf16, #tpu.memory_space<vmem>>, vector<8x128xbf16>
    %c2 = arith.constant 2 : index
    %c0_18 = arith.constant 0 : index
    %c0_19 = arith.constant 0 : index
    %18 = vector.load %arg2[%c2, %c0_18, %c0_19] : memref<9x16x8xbf16, #tpu.memory_space<vmem>>, vector<1x16x8xbf16>
    %19 = vector.shape_cast %18 : vector<1x16x8xbf16> to vector<16x8xbf16>
    %cst_20 = arith.constant dense<0.000000e+00> : vector<16x128xf32>
    %20 = tpu.matmul %19, %17, %cst_20 {dimension_numbers = #tpu.dot_dimension_numbers<[1], [0], [0], [1], [0, 0, 1, 1], [], []>} : vector<16x8xbf16>, vector<8x128xbf16>, vector<16x128xf32> -> vector<16x128xf32>
    %21 = arith.addf %16, %20 : vector<16x128xf32>
    %c0_21 = arith.constant 0 : index
    %c24 = arith.constant 24 : index
    %22 = vector.load %arg6[%c0_21, %c24] : memref<8x256xbf16, #tpu.memory_space<vmem>>, vector<8x128xbf16>
    %c3 = arith.constant 3 : index
    %c0_22 = arith.constant 0 : index
    %c0_23 = arith.constant 0 : index
    %23 = vector.load %arg2[%c3, %c0_22, %c0_23] : memref<9x16x8xbf16, #tpu.memory_space<vmem>>, vector<1x16x8xbf16>
    %24 = vector.shape_cast %23 : vector<1x16x8xbf16> to vector<16x8xbf16>
    %cst_24 = arith.constant dense<0.000000e+00> : vector<16x128xf32>
    %25 = tpu.matmul %24, %22, %cst_24 {dimension_numbers = #tpu.dot_dimension_numbers<[1], [0], [0], [1], [0, 0, 1, 1], [], []>} : vector<16x8xbf16>, vector<8x128xbf16>, vector<16x128xf32> -> vector<16x128xf32>
    %26 = arith.addf %21, %25 : vector<16x128xf32>
    %c0_25 = arith.constant 0 : index
    %c32_26 = arith.constant 32 : index
    %27 = vector.load %arg6[%c0_25, %c32_26] : memref<8x256xbf16, #tpu.memory_space<vmem>>, vector<8x128xbf16>
    %c4 = arith.constant 4 : index
    %c0_27 = arith.constant 0 : index
    %c0_28 = arith.constant 0 : index
    %28 = vector.load %arg2[%c4, %c0_27, %c0_28] : memref<9x16x8xbf16, #tpu.memory_space<vmem>>, vector<1x16x8xbf16>
    %29 = vector.shape_cast %28 : vector<1x16x8xbf16> to vector<16x8xbf16>
    %cst_29 = arith.constant dense<0.000000e+00> : vector<16x128xf32>
    %30 = tpu.matmul %29, %27, %cst_29 {dimension_numbers = #tpu.dot_dimension_numbers<[1], [0], [0], [1], [0, 0, 1, 1], [], []>} : vector<16x8xbf16>, vector<8x128xbf16>, vector<16x128xf32> -> vector<16x128xf32>
    %31 = arith.addf %26, %30 : vector<16x128xf32>
    %c0_30 = arith.constant 0 : index
    %c40 = arith.constant 40 : index
    %32 = vector.load %arg6[%c0_30, %c40] : memref<8x256xbf16, #tpu.memory_space<vmem>>, vector<8x128xbf16>
    %c5 = arith.constant 5 : index
    %c0_31 = arith.constant 0 : index
    %c0_32 = arith.constant 0 : index
    %33 = vector.load %arg2[%c5, %c0_31, %c0_32] : memref<9x16x8xbf16, #tpu.memory_space<vmem>>, vector<1x16x8xbf16>
    %34 = vector.shape_cast %33 : vector<1x16x8xbf16> to vector<16x8xbf16>
    %cst_33 = arith.constant dense<0.000000e+00> : vector<16x128xf32>
    %35 = tpu.matmul %34, %32, %cst_33 {dimension_numbers = #tpu.dot_dimension_numbers<[1], [0], [0], [1], [0, 0, 1, 1], [], []>} : vector<16x8xbf16>, vector<8x128xbf16>, vector<16x128xf32> -> vector<16x128xf32>
    %36 = arith.addf %31, %35 : vector<16x128xf32>
    %c0_34 = arith.constant 0 : index
    %c48 = arith.constant 48 : index
    %37 = vector.load %arg6[%c0_34, %c48] : memref<8x256xbf16, #tpu.memory_space<vmem>>, vector<8x128xbf16>
    %c6 = arith.constant 6 : index
    %c0_35 = arith.constant 0 : index
    %c0_36 = arith.constant 0 : index
    %38 = vector.load %arg2[%c6, %c0_35, %c0_36] : memref<9x16x8xbf16, #tpu.memory_space<vmem>>, vector<1x16x8xbf16>
    %39 = vector.shape_cast %38 : vector<1x16x8xbf16> to vector<16x8xbf16>
    %cst_37 = arith.constant dense<0.000000e+00> : vector<16x128xf32>
    %40 = tpu.matmul %39, %37, %cst_37 {dimension_numbers = #tpu.dot_dimension_numbers<[1], [0], [0], [1], [0, 0, 1, 1], [], []>} : vector<16x8xbf16>, vector<8x128xbf16>, vector<16x128xf32> -> vector<16x128xf32>
    %41 = arith.addf %36, %40 : vector<16x128xf32>
    %c0_38 = arith.constant 0 : index
    %c56 = arith.constant 56 : index
    %42 = vector.load %arg6[%c0_38, %c56] : memref<8x256xbf16, #tpu.memory_space<vmem>>, vector<8x128xbf16>
    %c7 = arith.constant 7 : index
    %c0_39 = arith.constant 0 : index
    %c0_40 = arith.constant 0 : index
    %43 = vector.load %arg2[%c7, %c0_39, %c0_40] : memref<9x16x8xbf16, #tpu.memory_space<vmem>>, vector<1x16x8xbf16>
    %44 = vector.shape_cast %43 : vector<1x16x8xbf16> to vector<16x8xbf16>
    %cst_41 = arith.constant dense<0.000000e+00> : vector<16x128xf32>
    %45 = tpu.matmul %44, %42, %cst_41 {dimension_numbers = #tpu.dot_dimension_numbers<[1], [0], [0], [1], [0, 0, 1, 1], [], []>} : vector<16x8xbf16>, vector<8x128xbf16>, vector<16x128xf32> -> vector<16x128xf32>
    %46 = arith.addf %41, %45 : vector<16x128xf32>
    %c0_42 = arith.constant 0 : index
    %c64 = arith.constant 64 : index
    %47 = vector.load %arg6[%c0_42, %c64] : memref<8x256xbf16, #tpu.memory_space<vmem>>, vector<8x128xbf16>
    %c8_43 = arith.constant 8 : index
    %c0_44 = arith.constant 0 : index
    %c0_45 = arith.constant 0 : index
    %48 = vector.load %arg2[%c8_43, %c0_44, %c0_45] : memref<9x16x8xbf16, #tpu.memory_space<vmem>>, vector<1x16x8xbf16>
    %49 = vector.shape_cast %48 : vector<1x16x8xbf16> to vector<16x8xbf16>
    %cst_46 = arith.constant dense<0.000000e+00> : vector<16x128xf32>
    %50 = tpu.matmul %49, %47, %cst_46 {dimension_numbers = #tpu.dot_dimension_numbers<[1], [0], [0], [1], [0, 0, 1, 1], [], []>} : vector<16x8xbf16>, vector<8x128xbf16>, vector<16x128xf32> -> vector<16x128xf32>
    %51 = arith.addf %46, %50 : vector<16x128xf32>
    %c0_47 = arith.constant 0 : index
    %c0_48 = arith.constant 0 : index
    %52 = vector.load %arg4[%c0_47, %c0_48] : memref<16x3xf32, #tpu.memory_space<vmem>>, vector<16x1xf32>
    %c0_49 = arith.constant 0 : index
    %c1_50 = arith.constant 1 : index
    %53 = vector.load %arg4[%c0_49, %c1_50] : memref<16x3xf32, #tpu.memory_space<vmem>>, vector<16x1xf32>
    %c0_51 = arith.constant 0 : index
    %c2_52 = arith.constant 2 : index
    %54 = vector.load %arg4[%c0_51, %c2_52] : memref<16x3xf32, #tpu.memory_space<vmem>>, vector<16x1xf32>
    %cst_53 = arith.constant dense<0.000000e+00> : vector<16xf32>
    %55 = vector.multi_reduction <add>, %51, %cst_53 [1] : vector<16x128xf32> to vector<16xf32>
    %56 = vector.shape_cast %55 : vector<16xf32> to vector<16x1xf32>
    %57 = arith.mulf %51, %51 : vector<16x128xf32>
    %cst_54 = arith.constant dense<0.000000e+00> : vector<16xf32>
    %58 = vector.multi_reduction <add>, %57, %cst_54 [1] : vector<16x128xf32> to vector<16xf32>
    %59 = vector.shape_cast %58 : vector<16xf32> to vector<16x1xf32>
    %cst_55 = arith.constant 1.280000e+02 : f32
    %60 = vector.broadcast %cst_55 : f32 to vector<16x1xf32>
    %61 = arith.mulf %60, %52 : vector<16x1xf32>
    %62 = arith.addf %56, %61 : vector<16x1xf32>
    %cst_56 = arith.constant 2.000000e+00 : f32
    %63 = vector.broadcast %cst_56 : f32 to vector<16x1xf32>
    %64 = arith.mulf %63, %52 : vector<16x1xf32>
    %65 = arith.mulf %64, %56 : vector<16x1xf32>
    %66 = arith.addf %59, %65 : vector<16x1xf32>
    %67 = arith.mulf %52, %52 : vector<16x1xf32>
    %cst_57 = arith.constant 1.280000e+02 : f32
    %68 = vector.broadcast %cst_57 : f32 to vector<16x1xf32>
    %69 = arith.mulf %68, %67 : vector<16x1xf32>
    %70 = arith.addf %66, %69 : vector<16x1xf32>
    %c0_58 = arith.constant 0 : index
    %c0_59 = arith.constant 0 : index
    %71 = vector.load %arg3[%c0_58, %c0_59] : memref<16x16xf32, #tpu.memory_space<vmem>>, vector<16x16xf32>
    %cst_60 = arith.constant dense<0.000000e+00> : vector<16x1xf32>
    %72 = tpu.matmul %71, %62, %cst_60 {dimension_numbers = #tpu.dot_dimension_numbers<[1], [0], [0], [1], [0, 0, 1, 1], [], []>} : vector<16x16xf32>, vector<16x1xf32>, vector<16x1xf32> -> vector<16x1xf32>
    %c0_61 = arith.constant 0 : index
    %c0_62 = arith.constant 0 : index
    %73 = vector.load %arg3[%c0_61, %c0_62] : memref<16x16xf32, #tpu.memory_space<vmem>>, vector<16x16xf32>
    %cst_63 = arith.constant dense<0.000000e+00> : vector<16x1xf32>
    %74 = tpu.matmul %73, %70, %cst_63 {dimension_numbers = #tpu.dot_dimension_numbers<[1], [0], [0], [1], [0, 0, 1, 1], [], []>} : vector<16x16xf32>, vector<16x1xf32>, vector<16x1xf32> -> vector<16x1xf32>
    %cst_64 = arith.constant 3.906250e-03 : f32
    %75 = vector.broadcast %cst_64 : f32 to vector<16x1xf32>
    %76 = arith.mulf %72, %75 : vector<16x1xf32>
    %cst_65 = arith.constant 3.906250e-03 : f32
    %77 = vector.broadcast %cst_65 : f32 to vector<16x1xf32>
    %78 = arith.mulf %74, %77 : vector<16x1xf32>
    %79 = arith.mulf %76, %76 : vector<16x1xf32>
    %80 = arith.subf %78, %79 : vector<16x1xf32>
    %cst_66 = arith.constant 0.000000e+00 : f32
    %81 = vector.broadcast %cst_66 : f32 to vector<16x1xf32>
    %82 = arith.maximumf %80, %81 : vector<16x1xf32>
    %cst_67 = arith.constant 9.99999974E-6 : f32
    %83 = vector.broadcast %cst_67 : f32 to vector<16x1xf32>
    %84 = arith.addf %82, %83 : vector<16x1xf32>
    %85 = math.rsqrt %84 : vector<16x1xf32>
    %86 = arith.mulf %85, %53 : vector<16x1xf32>
    %87 = arith.subf %52, %76 : vector<16x1xf32>
    %88 = arith.mulf %87, %86 : vector<16x1xf32>
    %89 = arith.addf %88, %54 : vector<16x1xf32>
    %90 = vector.broadcast %86 : vector<16x1xf32> to vector<16x128xf32>
    %91 = arith.mulf %51, %90 : vector<16x128xf32>
    %92 = vector.broadcast %89 : vector<16x1xf32> to vector<16x128xf32>
    %93 = arith.addf %91, %92 : vector<16x128xf32>
    %c0_68 = arith.constant 0 : index
    %c0_69 = arith.constant 0 : index
    %c0_70 = arith.constant 0 : index
    %94 = vector.load %arg5[%c0_68, %c0_69, %c0_70] : memref<1x16x128xf32, #tpu.memory_space<vmem>>, vector<1x16x128xf32>
    %95 = vector.shape_cast %94 : vector<1x16x128xf32> to vector<16x128xf32>
    %96 = vector.shape_cast %93 : vector<16x128xf32> to vector<1x16x128xf32>
    tpu.vector_store %arg5[%c0_68, %c0_69, %c0_70], %96 {strides = array<i32>} : memref<1x16x128xf32, #tpu.memory_space<vmem>>, vector<1x16x128xf32>,
    return
  }
  func.func @transform_0(%arg0: i32) -> (i32, i32, i32) {
    %c0_i32 = arith.constant 0 : i32
    %c0_i32_0 = arith.constant 0 : i32
    %c0_i32_1 = arith.constant 0 : i32
    return %arg0, %c0_i32, %c0_i32_0 : i32, i32, i32
  }
  func.func @transform_1(%arg0: i32) -> (i32, i32, i32) {
    %c0_i32 = arith.constant 0 : i32
    %c0_i32_0 = arith.constant 0 : i32
    %c0_i32_1 = arith.constant 0 : i32
    %c0_i32_2 = arith.constant 0 : i32
    return %c0_i32, %c0_i32_0, %c0_i32_1 : i32, i32, i32
  }
  func.func @transform_2(%arg0: i32) -> (i32, i32) {
    %c0_i32 = arith.constant 0 : i32
    %c0_i32_0 = arith.constant 0 : i32
    %c0_i32_1 = arith.constant 0 : i32
    return %c0_i32, %c0_i32_0 : i32, i32
  }
  func.func @transform_3(%arg0: i32) -> (i32, i32) {
    %c0_i32 = arith.constant 0 : i32
    %c0_i32_0 = arith.constant 0 : i32
    %c0_i32_1 = arith.constant 0 : i32
    return %c0_i32, %c0_i32_0 : i32, i32
  }
  func.func @transform_4(%arg0: i32) -> (i32, i32, i32) {
    %c0_i32 = arith.constant 0 : i32
    %c0_i32_0 = arith.constant 0 : i32
    %c0_i32_1 = arith.constant 0 : i32
    return %arg0, %c0_i32, %c0_i32_0 : i32, i32, i32
  }
}

</mosaic_0001>

<llo_original>
// kernel: tpu_custom_call.1
$region0: #{tpu_custom_call.1}
  #allocation0 [shape = 'u32[]', space=smem, size = 0x4, offset = 0x4, fixed_abs, tag = 'smem constant byte address 0x4 - core index']
  #allocation1 [shape = 'u32[144,128]{1,0:T(1,128)}', space=vmem, size = 0x12000, scoped, tag = 'internal scratch']
  #allocation2 [shape = 'bf16[8,256]{1,0:T(8,128)(2,1)}', space=vmem, size = 0x1000, scoped, tag = 'scratch operand']
  %s0 = inlined_call_operand.vmem [shape: f32[2,8,128], index: 0, kind: input, shape index: {}]
  %s1 = inlined_call_operand.vmem [shape: bf16[9,16,8], index: 1, kind: input, shape index: {}]
  %s2 = inlined_call_operand.vmem [shape: f32[16,16], index: 2, kind: input, shape index: {}]
  %s3 = inlined_call_operand.vmem [shape: f32[16,3], index: 3, kind: input, shape index: {}]
  %s4 = inlined_call_operand.hbm [shape: f32[2,16,128], index: 4, kind: output, shape index: {}]
  %s5 = sld [smem:[#allocation0]]
  $region49: #{tpu_custom_call.1} parent=0
    _
  %s7 = ssub.s32 1, %s5
  %s8 = scalar_select 0, %s7, %s5
  $region1: #{tpu_custom_call.1} parent=0
    #allocation3 [shape = 'u8[16384]{0}', space=vmem, size = 0x4000, scoped, tag = 'output window, operand 0']
    #allocation4 [shape = 's32[2]{0}', space=sflag, size = 0x8, scoped, tag = 'scoped memory for tpu_custom_call.1']
    %9 = vsyncpa [#allocation4], 0
    %s10 = scalar_lea.sflag [#allocation4], 1
    %11 = vsyncpa %s10, 0
    loop: start=0, step=1, limit=4
    $region2: #{tpu_custom_call.1} parent=1 // loop_pre_header
      _
    $region3: #{tpu_custom_call.1} parent=1 // loop_header
      %s13 = sphi 0, %s17
      %p14 = scmp.ge.s32.totalorder %s13, 4
      %s23 = sphi 0, %s25
      %s26 = sphi 0, %s23
      %s27 = sphi 0, %s26
      %s43 = sphi 0, %s27
      %s47 = sphi 0, %s47
      %s49 = sphi 0, %s47
      %s50 = sphi 0, %s49
      %s64 = sphi 0, %s50
      %s68 = sphi 0, %s68
      %s70 = sphi 0, %s68
      %s71 = sphi 0, %s70
      %s85 = sphi 0, %s71
      %s89 = sphi 0, %s89
      %s91 = sphi 0, %s89
      %s92 = sphi 0, %s91
      %s106 = sphi 0, %s92
      %s112 = sphi 0, %s114
      %s115 = sphi 0, %s112
      %s116 = sphi 0, %s115
      %s132 = sphi 0, %s116
    $region4: #{tpu_custom_call.1} parent=1 // loop_header_branch
      %16 = sbr.rel (%p14) target = $region8
    $region5: #{tpu_custom_call.1} parent=1 // loop_body
      %s18 = ssub.s32 %s13, 1
      %s19 = ssub.s32 %s13, 2
      %s20 = sadd.s32 %s13, 1
      %s21 = ssub.s32 %s13, %s20
      %p22 = scmp.eq.s32.totalorder %s21, 0
      %s24 = sadd.s32 %s23, 1
      %s25 = scalar_select %p22, %s23, %s24
      %p28 = pneg %p22
      %p29 = scmp.eq.s32.totalorder %s13, 1
      %p30 = por %p28, %p29
      %p31 = scmp.ne.s32.totalorder %s23, %s26
      %p32 = scmp.eq.s32.totalorder %s13, 0
      %p33 = por %p31, %p32
      %p34 = scmp.ne.s32.totalorder %s23, %s26
      %p35 = scmp.eq.s32.totalorder %s18, 1
      %p36 = por %p34, %p35
      %p37 = scmp.ne.s32.totalorder %s26, %s27
      %p38 = scmp.eq.s32.totalorder %s18, 0
      %p39 = por %p37, %p38
      %p40 = scmp.ne.s32.totalorder %s26, %s27
      %p41 = scmp.eq.s32.totalorder %s19, 1
      %p42 = por %p40, %p41
      %p44 = scmp.ne.s32.totalorder %s27, %s43
      %p45 = scmp.eq.s32.totalorder %s19, 0
      %p46 = por %p44, %p45
      %s48 = sadd.s32 %s47, 1
      %p51 = scmp.eq.s32.totalorder %s13, 1
      %p52 = scmp.ne.s32.totalorder %s47, %s49
      %p53 = scmp.eq.s32.totalorder %s13, 0
      %p54 = por %p52, %p53
      %p55 = scmp.ne.s32.totalorder %s47, %s49
      %p56 = scmp.eq.s32.totalorder %s18, 1
      %p57 = por %p55, %p56
      %p58 = scmp.ne.s32.totalorder %s49, %s50
      %p59 = scmp.eq.s32.totalorder %s18, 0
      %p60 = por %p58, %p59
      %p61 = scmp.ne.s32.totalorder %s49, %s50
      %p62 = scmp.eq.s32.totalorder %s19, 1
      %p63 = por %p61, %p62
      %p65 = scmp.ne.s32.totalorder %s50, %s64
      %p66 = scmp.eq.s32.totalorder %s19, 0
      %p67 = por %p65, %p66
      %s69 = sadd.s32 %s68, 1
      %p72 = scmp.eq.s32.totalorder %s13, 1
      %p73 = scmp.ne.s32.totalorder %s68, %s70
      %p74 = scmp.eq.s32.totalorder %s13, 0
      %p75 = por %p73, %p74
      %p76 = scmp.ne.s32.totalorder %s68, %s70
      %p77 = scmp.eq.s32.totalorder %s18, 1
      %p78 = por %p76, %p77
      %p79 = scmp.ne.s32.totalorder %s70, %s71
      %p80 = scmp.eq.s32.totalorder %s18, 0
      %p81 = por %p79, %p80
      %p82 = scmp.ne.s32.totalorder %s70, %s71
      %p83 = scmp.eq.s32.totalorder %s19, 1
      %p84 = por %p82, %p83
      %p86 = scmp.ne.s32.totalorder %s71, %s85
      %p87 = scmp.eq.s32.totalorder %s19, 0
      %p88 = por %p86, %p87
      %s90 = sadd.s32 %s89, 1
      %p93 = scmp.eq.s32.totalorder %s13, 1
      %p94 = scmp.ne.s32.totalorder %s89, %s91
      %p95 = scmp.eq.s32.totalorder %s13, 0
      %p96 = por %p94, %p95
      %p97 = scmp.ne.s32.totalorder %s89, %s91
      %p98 = scmp.eq.s32.totalorder %s18, 1
      %p99 = por %p97, %p98
      %p100 = scmp.ne.s32.totalorder %s91, %s92
      %p101 = scmp.eq.s32.totalorder %s18, 0
      %p102 = por %p100, %p101
      %p103 = scmp.ne.s32.totalorder %s91, %s92
      %p104 = scmp.eq.s32.totalorder %s19, 1
      %p105 = por %p103, %p104
      %p107 = scmp.ne.s32.totalorder %s92, %s106
      %p108 = scmp.eq.s32.totalorder %s19, 0
      %p109 = por %p107, %p108
      %s110 = ssub.s32 %s13, %s20
      %p111 = scmp.eq.s32.totalorder %s110, 0
      %s113 = sadd.s32 %s112, 1
      %s114 = scalar_select %p111, %s112, %s113
      %p117 = pneg %p111
      %p118 = scmp.eq.s32.totalorder %s13, 1
      %p119 = por %p117, %p118
      %p120 = scmp.ne.s32.totalorder %s112, %s115
      %p121 = scmp.eq.s32.totalorder %s13, 0
      %p122 = por %p120, %p121
      %p123 = scmp.ne.s32.totalorder %s112, %s115
      %p124 = scmp.eq.s32.totalorder %s18, 1
      %p125 = por %p123, %p124
      %p126 = scmp.ne.s32.totalorder %s115, %s116
      %p127 = scmp.eq.s32.totalorder %s18, 0
      %p128 = por %p126, %p127
      %p129 = scmp.ne.s32.totalorder %s115, %s116
      %p130 = scmp.eq.s32.totalorder %s19, 1
      %p131 = por %p129, %p130
      %p133 = scmp.ne.s32.totalorder %s116, %s132
      %p134 = scmp.eq.s32.totalorder %s19, 0
      %p135 = por %p133, %p134
      %p136 = scmp.le.s32.totalorder 1, %s13
      %p137 = scmp.lt.s32.totalorder %s13, 3
      %p138 = pnand %p136, %p137
      %p139 = pneg %p138
      // Predicated region
      $region9: #{tpu_custom_call.1} parent=5 // pred_check
        _
      $region10: #{tpu_custom_call.1} parent=5 // pred_check_branch
        %141 = sbr.rel (%p138) target = $region12
      $region11: #{tpu_custom_call.1} parent=5 // pred_region
        %s142 = ssub.s32 %s13, 1
        // Predicated region
        $region13: #{tpu_custom_call.1} parent=11 // pred_check
          %p143 = pneg %p60
        $region14: #{tpu_custom_call.1} parent=11 // pred_check_branch
          %145 = sbr.rel (%p143) target = $region16
        $region15: #{tpu_custom_call.1} parent=11 // pred_region
          _
        $region16: #{tpu_custom_call.1} parent=11 // pred_fallthru
          _
        // Predicated region
        $region17: #{tpu_custom_call.1} parent=11 // pred_check
          %p146 = pneg %p81
        $region18: #{tpu_custom_call.1} parent=11 // pred_check_branch
          %148 = sbr.rel (%p146) target = $region20
        $region19: #{tpu_custom_call.1} parent=11 // pred_region
          _
        $region20: #{tpu_custom_call.1} parent=11 // pred_fallthru
          _
        // Predicated region
        $region21: #{tpu_custom_call.1} parent=11 // pred_check
          %p149 = pneg %p102
        $region22: #{tpu_custom_call.1} parent=11 // pred_check_branch
          %151 = sbr.rel (%p149) target = $region24
        $region23: #{tpu_custom_call.1} parent=11 // pred_region
          _
        $region24: #{tpu_custom_call.1} parent=11 // pred_fallthru
          _
      $region12: #{tpu_custom_call.1} parent=5 // pred_fallthru
        _
      %p152 = scmp.lt.s32.totalorder %s13, 2
      // Predicated region
      $region25: #{tpu_custom_call.1} parent=5 // pred_check
        %p153 = pneg %p152
      $region26: #{tpu_custom_call.1} parent=5 // pred_check_branch
        %155 = sbr.rel (%p153) target = $region28
      $region27: #{tpu_custom_call.1} parent=5 // pred_region
        // Predicated region
        $region29: #{tpu_custom_call.1} parent=27 // pred_check
          %p156 = pneg %p33
        $region30: #{tpu_custom_call.1} parent=27 // pred_check_branch
          %158 = sbr.rel (%p156) target = $region32
        $region31: #{tpu_custom_call.1} parent=27 // pred_region
          %p159 = scmp.lt.s32.totalorder %s13, 1
          %s160 = scalar_select %p159, %s13, 1
          %s161 = smul.addr %s160, 8
          %s162 = scalar_lea.vmem %s0, %s161
        $region32: #{tpu_custom_call.1} parent=27 // pred_fallthru
          _
      $region28: #{tpu_custom_call.1} parent=5 // pred_fallthru
        _
      %p163 = scmp.le.s32.totalorder 1, %s13
      %p164 = scmp.lt.s32.totalorder %s13, 3
      %p165 = pnand %p163, %p164
      %p166 = pneg %p165
      // Predicated region
      $region33: #{tpu_custom_call.1} parent=5 // pred_check
        _
      $region34: #{tpu_custom_call.1} parent=5 // pred_check_branch
        %168 = sbr.rel (%p165) target = $region36
      $region35: #{tpu_custom_call.1} parent=5 // pred_region
        %s169 = ssub.s32 %s13, 1
        %p170 = scmp.lt.s32.totalorder %s18, 1
        %s171 = scalar_select %p170, %s18, 1
        %s172 = smul.addr %s171, 8
        %s173 = scalar_lea.vmem %s0, %s172
        %p174 = pneg %p39
        %p175 = pneg %p36
        %p176 = pneg %p60
        %p177 = pneg %p57
        %p178 = pneg %p81
        %p179 = pneg %p78
        %p180 = pneg %p102
        %p181 = pneg %p99
        %p182 = pneg %p128
        %p183 = pneg %p125
        %s184 = sand.u32 %s115, 1
        %s185 = scalar_lea.sflag [#allocation4], %s184
        %s186 = sand.u32 %s115, 1
        %s187 = smul.addr %s186, 16
        %s188 = scalar_lea.vmem [#allocation3], %s187
        %p189 = scmp.lt.s32.totalorder %s18, 1
        %s190 = scalar_select %p189, %s18, 1
        %s191 = smul.addr %s190, 8
        %s192 = scalar_lea.vmem %s0, %s191
        %vm194 = vcmask 257024
        %195 = vst.msk [vmem:[#allocation2] sm:$0xf] %vm194, 0
        %vm196 = vcmask 1043712
        %197 = vst.msk [vmem:[#allocation2 + $0x4] sm:$0xf] %vm196, 0
        %v198 = vld [vmem:[%s192] sm:$0xff]
        %v199 = vpack.c.bf16 %v198, %v198
        %v201 = vunpack.c.l.b16 %v199
        %v202 = vpack.c.b16 %v201, %v201
        %203 = vrot.lane.b32.xlu0 %v202, 32
        %v204 = vpop.permute.xlu0 %203
        %v205 = vrot.slane %v204, 4
        %vm206 = vcmask 261120
        %v207 = vsel %vm206, %v205, %v204
        %vm209 = vcmask 261124
        %vm210 = vmor %vm209, %vm196
        %211 = vst.msk [vmem:[#allocation2] sm:$0xff] %vm210, %v207
        %v212 = vld [vmem:[#allocation2] sm:$0xf]
        %v213 = vld [vmem:[%s1] sm:$0xf]
        %v214 = vld [vmem:[%s1 + $0x4] sm:$0xf]
        %v215 = vld [vmem:[#allocation2] sm:$0xff]
        %s216 = scalar_lea.vmem %s1, 8
        %v217 = vld [vmem:[%s216] sm:$0xf]
        %v218 = vld [vmem:[%s216 + $0x4] sm:$0xf]
        %v221 = vunpack.c.l.b16 %v217
        %v222 = vunpack.c.l.b16 %v218
        %v223 = vpack.c.b16 %v222, %v221
        %v225 = vunpack.c.l.b16 %v215
        %v226 = vunpack.c.h.b16 %v215
        %v227 = vpack.c.b16 %v225, %v225
        %v228 = vpack.c.b16 %v226, %v226
        %229 = vrot.lane.b32.xlu0 %v227, 120
        %v230 = vpop.permute.xlu0 %229
        %231 = vrot.lane.b32.xlu0 %v228, 120
        %v232 = vpop.permute.xlu0 %231
        %vm233 = vcmask 982016
        %v234 = vsel %vm233, %v230, %v232
        %vm235 = vcmask 64512
        %v237 = vsel %vm235, %v223, 0
        %vm239 = vcmask 1043456
        %v241 = vsel %vm239, %v234, 0
        %243 = vmatprep.subr.bf16.mxu0 0
        %244 = vmatpush1.bf16.msra.mxu0 %v241
        %245 = vmatprep.subr.bf16.mxu0 0
        %246 = vmatpush1.bf16.msra.mxu0 0
        %247 = vmatprep.subr.bf16.mxu0 0
        %248 = vmatpush1.bf16.msra.mxu0 0
        %249 = vmatprep.subr.bf16.mxu0 0
        %250 = vmatpush1.bf16.msra.mxu0 0
        %251 = vmatprep.subr.bf16.mxu0 0
        %252 = vmatpush1.bf16.msra.mxu0 0
        %253 = vmatprep.subr.bf16.mxu0 0
        %254 = vmatpush1.bf16.msra.mxu0 0
        %255 = vmatprep.subr.bf16.mxu0 0
        %256 = vmatpush1.bf16.msra.mxu0 0
        %257 = vmatprep.subr.bf16.mxu0 0
        %258 = vmatpush1.bf16.msra.mxu0 0
        %259 = vmatprep.subr.bf16.mxu0 0
        %260 = vmatpush1.bf16.msra.mxu0 0
        %261 = vmatprep.subr.bf16.mxu0 0
        %262 = vmatpush1.bf16.msra.mxu0 0
        %263 = vmatprep.subr.bf16.mxu0 0
        %264 = vmatpush1.bf16.msra.mxu0 0
        %265 = vmatprep.subr.bf16.mxu0 0
        %266 = vmatpush1.bf16.msra.mxu0 0
        %267 = vmatprep.subr.bf16.mxu0 0
        %268 = vmatpush1.bf16.msra.mxu0 0
        %269 = vmatprep.subr.bf16.mxu0 0
        %270 = vmatpush1.bf16.msra.mxu0 0
        %271 = vmatprep.subr.bf16.mxu0 0
        %272 = vmatpush1.bf16.msra.mxu0 0
        %273 = vmatprep.subr.bf16.mxu0 0
        %274 = vmatpush1.bf16.msra.mxu0 0
        %275 = vmatprep.mubr.bf16.mxu0 0
        %276 = vmatmul.mubr.bf16.gmra.mrb[0].mxu0 %v237
        %v277 = vpop.f32.mrb[0].mxu0
        %v278 = vadd.f32 0.0, %v277
        %v279 = vpop.f32.mrb[0].mxu0
        %v280 = vpop.f32.mrb[0].mxu0
        %v281 = vadd.f32 0.0, %v280
        %v282 = vpop.f32.mrb[0].mxu0
        %283 = vdwg.mxu0
        %v286 = vunpack.c.l.b16 %v213
        %v287 = vunpack.c.l.b16 %v214
        %v288 = vpack.c.b16 %v287, %v286
        %v290 = vsel %vm235, %v288, 0
        %v293 = vsel %vm239, %v212, 0
        %295 = vmatprep.subr.bf16.mxu0 0
        %296 = vmatpush1.bf16.msra.mxu0 %v293
        %297 = vmatprep.subr.bf16.mxu0 0
        %298 = vmatpush1.bf16.msra.mxu0 0
        %299 = vmatprep.subr.bf16.mxu0 0
        %300 = vmatpush1.bf16.msra.mxu0 0
        %301 = vmatprep.subr.bf16.mxu0 0
        %302 = vmatpush1.bf16.msra.mxu0 0
        %303 = vmatprep.subr.bf16.mxu0 0
        %304 = vmatpush1.bf16.msra.mxu0 0
        %305 = vmatprep.subr.bf16.mxu0 0
        %306 = vmatpush1.bf16.msra.mxu0 0
        %307 = vmatprep.subr.bf16.mxu0 0
        %308 = vmatpush1.bf16.msra.mxu0 0
        %309 = vmatprep.subr.bf16.mxu0 0
        %310 = vmatpush1.bf16.msra.mxu0 0
        %311 = vmatprep.subr.bf16.mxu0 0
        %312 = vmatpush1.bf16.msra.mxu0 0
        %313 = vmatprep.subr.bf16.mxu0 0
        %314 = vmatpush1.bf16.msra.mxu0 0
        %315 = vmatprep.subr.bf16.mxu0 0
        %316 = vmatpush1.bf16.msra.mxu0 0
        %317 = vmatprep.subr.bf16.mxu0 0
        %318 = vmatpush1.bf16.msra.mxu0 0
        %319 = vmatprep.subr.bf16.mxu0 0
        %320 = vmatpush1.bf16.msra.mxu0 0
        %321 = vmatprep.subr.bf16.mxu0 0
        %322 = vmatpush1.bf16.msra.mxu0 0
        %323 = vmatprep.subr.bf16.mxu0 0
        %324 = vmatpush1.bf16.msra.mxu0 0
        %325 = vmatprep.subr.bf16.mxu0 0
        %326 = vmatpush1.bf16.msra.mxu0 0
        %327 = vmatprep.mubr.bf16.mxu0 0
        %328 = vmatmul.mubr.bf16.gmra.mrb[0].mxu0 %v290
        %v329 = vpop.f32.mrb[0].mxu0
        %v330 = vadd.f32 %v278, %v329
        %v331 = vpop.f32.mrb[0].mxu0
        %v332 = vpop.f32.mrb[0].mxu0
        %v333 = vadd.f32 %v281, %v332
        %v334 = vpop.f32.mrb[0].mxu0
        %335 = vdwg.mxu0
        %s336 = scalar_lea.vmem %s1, 16
        %v337 = vld [vmem:[%s336] sm:$0xf]
        %v338 = vld [vmem:[%s336 + $0x4] sm:$0xf]
        %v341 = vunpack.c.l.b16 %v337
        %v342 = vunpack.c.l.b16 %v338
        %v343 = vpack.c.b16 %v342, %v341
        %344 = vrot.lane.b32.xlu0 %v227, 112
        %v345 = vpop.permute.xlu0 %344
        %346 = vrot.lane.b32.xlu0 %v228, 112
        %v347 = vpop.permute.xlu0 %346
        %vm348 = vcmask 916480
        %v349 = vsel %vm348, %v345, %v347
        %v351 = vsel %vm235, %v343, 0
        %v354 = vsel %vm239, %v349, 0
        %356 = vmatprep.subr.bf16.mxu0 0
        %357 = vmatpush1.bf16.msra.mxu0 %v354
        %358 = vmatprep.subr.bf16.mxu0 0
        %359 = vmatpush1.bf16.msra.mxu0 0
        %360 = vmatprep.subr.bf16.mxu0 0
        %361 = vmatpush1.bf16.msra.mxu0 0
        %362 = vmatprep.subr.bf16.mxu0 0
        %363 = vmatpush1.bf16.msra.mxu0 0
        %364 = vmatprep.subr.bf16.mxu0 0
        %365 = vmatpush1.bf16.msra.mxu0 0
        %366 = vmatprep.subr.bf16.mxu0 0
        %367 = vmatpush1.bf16.msra.mxu0 0
        %368 = vmatprep.subr.bf16.mxu0 0
        %369 = vmatpush1.bf16.msra.mxu0 0
        %370 = vmatprep.subr.bf16.mxu0 0
        %371 = vmatpush1.bf16.msra.mxu0 0
        %372 = vmatprep.subr.bf16.mxu0 0
        %373 = vmatpush1.bf16.msra.mxu0 0
        %374 = vmatprep.subr.bf16.mxu0 0
        %375 = vmatpush1.bf16.msra.mxu0 0
        %376 = vmatprep.subr.bf16.mxu0 0
        %377 = vmatpush1.bf16.msra.mxu0 0
        %378 = vmatprep.subr.bf16.mxu0 0
        %379 = vmatpush1.bf16.msra.mxu0 0
        %380 = vmatprep.subr.bf16.mxu0 0
        %381 = vmatpush1.bf16.msra.mxu0 0
        %382 = vmatprep.subr.bf16.mxu0 0
        %383 = vmatpush1.bf16.msra.mxu0 0
        %384 = vmatprep.subr.bf16.mxu0 0
        %385 = vmatpush1.bf16.msra.mxu0 0
        %386 = vmatprep.subr.bf16.mxu0 0
        %387 = vmatpush1.bf16.msra.mxu0 0
        %388 = vmatprep.mubr.bf16.mxu0 0
        %389 = vmatmul.mubr.bf16.gmra.mrb[0].mxu0 %v351
        %v390 = vpop.f32.mrb[0].mxu0
        %v391 = vadd.f32 0.0, %v390
        %v392 = vpop.f32.mrb[0].mxu0
        %v393 = vpop.f32.mrb[0].mxu0
        %v394 = vadd.f32 0.0, %v393
        %v395 = vpop.f32.mrb[0].mxu0
        %396 = vdwg.mxu0
        %v397 = vadd.f32 %v330, %v391
        %v398 = vadd.f32 %v333, %v394
        %s399 = scalar_lea.vmem %s1, 24
        %v400 = vld [vmem:[%s399] sm:$0xf]
        %v401 = vld [vmem:[%s399 + $0x4] sm:$0xf]
        %v404 = vunpack.c.l.b16 %v400
        %v405 = vunpack.c.l.b16 %v401
        %v406 = vpack.c.b16 %v405, %v404
        %407 = vrot.lane.b32.xlu0 %v227, 104
        %v408 = vpop.permute.xlu0 %407
        %409 = vrot.lane.b32.xlu0 %v228, 104
        %v410 = vpop.permute.xlu0 %409
        %vm411 = vcmask 850944
        %v412 = vsel %vm411, %v408, %v410
        %v414 = vsel %vm235, %v406, 0
        %v417 = vsel %vm239, %v412, 0
        %419 = vmatprep.subr.bf16.mxu0 0
        %420 = vmatpush1.bf16.msra.mxu0 %v417
        %421 = vmatprep.subr.bf16.mxu0 0
        %422 = vmatpush1.bf16.msra.mxu0 0
        %423 = vmatprep.subr.bf16.mxu0 0
        %424 = vmatpush1.bf16.msra.mxu0 0
        %425 = vmatprep.subr.bf16.mxu0 0
        %426 = vmatpush1.bf16.msra.mxu0 0
        %427 = vmatprep.subr.bf16.mxu0 0
        %428 = vmatpush1.bf16.msra.mxu0 0
        %429 = vmatprep.subr.bf16.mxu0 0
        %430 = vmatpush1.bf16.msra.mxu0 0
        %431 = vmatprep.subr.bf16.mxu0 0
        %432 = vmatpush1.bf16.msra.mxu0 0
        %433 = vmatprep.subr.bf16.mxu0 0
        %434 = vmatpush1.bf16.msra.mxu0 0
        %435 = vmatprep.subr.bf16.mxu0 0
        %436 = vmatpush1.bf16.msra.mxu0 0
        %437 = vmatprep.subr.bf16.mxu0 0
        %438 = vmatpush1.bf16.msra.mxu0 0
        %439 = vmatprep.subr.bf16.mxu0 0
        %440 = vmatpush1.bf16.msra.mxu0 0
        %441 = vmatprep.subr.bf16.mxu0 0
        %442 = vmatpush1.bf16.msra.mxu0 0
        %443 = vmatprep.subr.bf16.mxu0 0
        %444 = vmatpush1.bf16.msra.mxu0 0
        %445 = vmatprep.subr.bf16.mxu0 0
        %446 = vmatpush1.bf16.msra.mxu0 0
        %447 = vmatprep.subr.bf16.mxu0 0
        %448 = vmatpush1.bf16.msra.mxu0 0
        %449 = vmatprep.subr.bf16.mxu0 0
        %450 = vmatpush1.bf16.msra.mxu0 0
        %451 = vmatprep.mubr.bf16.mxu0 0
        %452 = vmatmul.mubr.bf16.gmra.mrb[0].mxu0 %v414
        %v453 = vpop.f32.mrb[0].mxu0
        %v454 = vadd.f32 0.0, %v453
        %v455 = vpop.f32.mrb[0].mxu0
        %v456 = vpop.f32.mrb[0].mxu0
        %v457 = vadd.f32 0.0, %v456
        %v458 = vpop.f32.mrb[0].mxu0
        %459 = vdwg.mxu0
        %v460 = vadd.f32 %v397, %v454
        %v461 = vadd.f32 %v398, %v457
        %s462 = scalar_lea.vmem %s1, 32
        %v463 = vld [vmem:[%s462] sm:$0xf]
        %v464 = vld [vmem:[%s462 + $0x4] sm:$0xf]
        %v467 = vunpack.c.l.b16 %v463
        %v468 = vunpack.c.l.b16 %v464
        %v469 = vpack.c.b16 %v468, %v467
        %470 = vrot.lane.b32.xlu0 %v227, 96
        %v471 = vpop.permute.xlu0 %470
        %472 = vrot.lane.b32.xlu0 %v228, 96
        %v473 = vpop.permute.xlu0 %472
        %vm474 = vcmask 785408
        %v475 = vsel %vm474, %v471, %v473
        %v477 = vsel %vm235, %v469, 0
        %v480 = vsel %vm239, %v475, 0
        %482 = vmatprep.subr.bf16.mxu0 0
        %483 = vmatpush1.bf16.msra.mxu0 %v480
        %484 = vmatprep.subr.bf16.mxu0 0
        %485 = vmatpush1.bf16.msra.mxu0 0
        %486 = vmatprep.subr.bf16.mxu0 0
        %487 = vmatpush1.bf16.msra.mxu0 0
        %488 = vmatprep.subr.bf16.mxu0 0
        %489 = vmatpush1.bf16.msra.mxu0 0
        %490 = vmatprep.subr.bf16.mxu0 0
        %491 = vmatpush1.bf16.msra.mxu0 0
        %492 = vmatprep.subr.bf16.mxu0 0
        %493 = vmatpush1.bf16.msra.mxu0 0
        %494 = vmatprep.subr.bf16.mxu0 0
        %495 = vmatpush1.bf16.msra.mxu0 0
        %496 = vmatprep.subr.bf16.mxu0 0
        %497 = vmatpush1.bf16.msra.mxu0 0
        %498 = vmatprep.subr.bf16.mxu0 0
        %499 = vmatpush1.bf16.msra.mxu0 0
        %500 = vmatprep.subr.bf16.mxu0 0
        %501 = vmatpush1.bf16.msra.mxu0 0
        %502 = vmatprep.subr.bf16.mxu0 0
        %503 = vmatpush1.bf16.msra.mxu0 0
        %504 = vmatprep.subr.bf16.mxu0 0
        %505 = vmatpush1.bf16.msra.mxu0 0
        %506 = vmatprep.subr.bf16.mxu0 0
        %507 = vmatpush1.bf16.msra.mxu0 0
        %508 = vmatprep.subr.bf16.mxu0 0
        %509 = vmatpush1.bf16.msra.mxu0 0
        %510 = vmatprep.subr.bf16.mxu0 0
        %511 = vmatpush1.bf16.msra.mxu0 0
        %512 = vmatprep.subr.bf16.mxu0 0
        %513 = vmatpush1.bf16.msra.mxu0 0
        %514 = vmatprep.mubr.bf16.mxu0 0
        %515 = vmatmul.mubr.bf16.gmra.mrb[0].mxu0 %v477
        %v516 = vpop.f32.mrb[0].mxu0
        %v517 = vadd.f32 0.0, %v516
        %v518 = vpop.f32.mrb[0].mxu0
        %v519 = vpop.f32.mrb[0].mxu0
        %v520 = vadd.f32 0.0, %v519
        %v521 = vpop.f32.mrb[0].mxu0
        %522 = vdwg.mxu0
        %v523 = vadd.f32 %v460, %v517
        %v524 = vadd.f32 %v461, %v520
        %s525 = scalar_lea.vmem %s1, 40
        %v526 = vld [vmem:[%s525] sm:$0xf]
        %v527 = vld [vmem:[%s525 + $0x4] sm:$0xf]
        %v530 = vunpack.c.l.b16 %v526
        %v531 = vunpack.c.l.b16 %v527
        %v532 = vpack.c.b16 %v531, %v530
        %533 = vrot.lane.b32.xlu0 %v227, 88
        %v534 = vpop.permute.xlu0 %533
        %535 = vrot.lane.b32.xlu0 %v228, 88
        %v536 = vpop.permute.xlu0 %535
        %vm537 = vcmask 719872
        %v538 = vsel %vm537, %v534, %v536
        %v540 = vsel %vm235, %v532, 0
        %v543 = vsel %vm239, %v538, 0
        %545 = vmatprep.subr.bf16.mxu0 0
        %546 = vmatpush1.bf16.msra.mxu0 %v543
        %547 = vmatprep.subr.bf16.mxu0 0
        %548 = vmatpush1.bf16.msra.mxu0 0
        %549 = vmatprep.subr.bf16.mxu0 0
        %550 = vmatpush1.bf16.msra.mxu0 0
        %551 = vmatprep.subr.bf16.mxu0 0
        %552 = vmatpush1.bf16.msra.mxu0 0
        %553 = vmatprep.subr.bf16.mxu0 0
        %554 = vmatpush1.bf16.msra.mxu0 0
        %555 = vmatprep.subr.bf16.mxu0 0
        %556 = vmatpush1.bf16.msra.mxu0 0
        %557 = vmatprep.subr.bf16.mxu0 0
        %558 = vmatpush1.bf16.msra.mxu0 0
        %559 = vmatprep.subr.bf16.mxu0 0
        %560 = vmatpush1.bf16.msra.mxu0 0
        %561 = vmatprep.subr.bf16.mxu0 0
        %562 = vmatpush1.bf16.msra.mxu0 0
        %563 = vmatprep.subr.bf16.mxu0 0
        %564 = vmatpush1.bf16.msra.mxu0 0
        %565 = vmatprep.subr.bf16.mxu0 0
        %566 = vmatpush1.bf16.msra.mxu0 0
        %567 = vmatprep.subr.bf16.mxu0 0
        %568 = vmatpush1.bf16.msra.mxu0 0
        %569 = vmatprep.subr.bf16.mxu0 0
        %570 = vmatpush1.bf16.msra.mxu0 0
        %571 = vmatprep.subr.bf16.mxu0 0
        %572 = vmatpush1.bf16.msra.mxu0 0
        %573 = vmatprep.subr.bf16.mxu0 0
        %574 = vmatpush1.bf16.msra.mxu0 0
        %575 = vmatprep.subr.bf16.mxu0 0
        %576 = vmatpush1.bf16.msra.mxu0 0
        %577 = vmatprep.mubr.bf16.mxu0 0
        %578 = vmatmul.mubr.bf16.gmra.mrb[0].mxu0 %v540
        %v579 = vpop.f32.mrb[0].mxu0
        %v580 = vadd.f32 0.0, %v579
        %v581 = vpop.f32.mrb[0].mxu0
        %v582 = vpop.f32.mrb[0].mxu0
        %v583 = vadd.f32 0.0, %v582
        %v584 = vpop.f32.mrb[0].mxu0
        %585 = vdwg.mxu0
        %v586 = vadd.f32 %v523, %v580
        %v587 = vadd.f32 %v524, %v583
        %s588 = scalar_lea.vmem %s1, 48
        %v589 = vld [vmem:[%s588] sm:$0xf]
        %v590 = vld [vmem:[%s588 + $0x4] sm:$0xf]
        %v593 = vunpack.c.l.b16 %v589
        %v594 = vunpack.c.l.b16 %v590
        %v595 = vpack.c.b16 %v594, %v593
        %596 = vrot.lane.b32.xlu0 %v227, 80
        %v597 = vpop.permute.xlu0 %596
        %598 = vrot.lane.b32.xlu0 %v228, 80
        %v599 = vpop.permute.xlu0 %598
        %vm600 = vcmask 654336
        %v601 = vsel %vm600, %v597, %v599
        %v603 = vsel %vm235, %v595, 0
        %v606 = vsel %vm239, %v601, 0
        %608 = vmatprep.subr.bf16.mxu0 0
        %609 = vmatpush1.bf16.msra.mxu0 %v606
        %610 = vmatprep.subr.bf16.mxu0 0
        %611 = vmatpush1.bf16.msra.mxu0 0
        %612 = vmatprep.subr.bf16.mxu0 0
        %613 = vmatpush1.bf16.msra.mxu0 0
        %614 = vmatprep.subr.bf16.mxu0 0
        %615 = vmatpush1.bf16.msra.mxu0 0
        %616 = vmatprep.subr.bf16.mxu0 0
        %617 = vmatpush1.bf16.msra.mxu0 0
        %618 = vmatprep.subr.bf16.mxu0 0
        %619 = vmatpush1.bf16.msra.mxu0 0
        %620 = vmatprep.subr.bf16.mxu0 0
        %621 = vmatpush1.bf16.msra.mxu0 0
        %622 = vmatprep.subr.bf16.mxu0 0
        %623 = vmatpush1.bf16.msra.mxu0 0
        %624 = vmatprep.subr.bf16.mxu0 0
        %625 = vmatpush1.bf16.msra.mxu0 0
        %626 = vmatprep.subr.bf16.mxu0 0
        %627 = vmatpush1.bf16.msra.mxu0 0
        %628 = vmatprep.subr.bf16.mxu0 0
        %629 = vmatpush1.bf16.msra.mxu0 0
        %630 = vmatprep.subr.bf16.mxu0 0
        %631 = vmatpush1.bf16.msra.mxu0 0
        %632 = vmatprep.subr.bf16.mxu0 0
        %633 = vmatpush1.bf16.msra.mxu0 0
        %634 = vmatprep.subr.bf16.mxu0 0
        %635 = vmatpush1.bf16.msra.mxu0 0
        %636 = vmatprep.subr.bf16.mxu0 0
        %637 = vmatpush1.bf16.msra.mxu0 0
        %638 = vmatprep.subr.bf16.mxu0 0
        %639 = vmatpush1.bf16.msra.mxu0 0
        %640 = vmatprep.mubr.bf16.mxu0 0
        %641 = vmatmul.mubr.bf16.gmra.mrb[0].mxu0 %v603
        %v642 = vpop.f32.mrb[0].mxu0
        %v643 = vadd.f32 0.0, %v642
        %v644 = vpop.f32.mrb[0].mxu0
        %v645 = vpop.f32.mrb[0].mxu0
        %v646 = vadd.f32 0.0, %v645
        %v647 = vpop.f32.mrb[0].mxu0
        %648 = vdwg.mxu0
        %v649 = vadd.f32 %v586, %v643
        %v650 = vadd.f32 %v587, %v646
        %s651 = scalar_lea.vmem %s1, 56
        %v652 = vld [vmem:[%s651] sm:$0xf]
        %v653 = vld [vmem:[%s651 + $0x4] sm:$0xf]
        %v656 = vunpack.c.l.b16 %v652
        %v657 = vunpack.c.l.b16 %v653
        %v658 = vpack.c.b16 %v657, %v656
        %659 = vrot.lane.b32.xlu0 %v227, 72
        %v660 = vpop.permute.xlu0 %659
        %661 = vrot.lane.b32.xlu0 %v228, 72
        %v662 = vpop.permute.xlu0 %661
        %vm663 = vcmask 588800
        %v664 = vsel %vm663, %v660, %v662
        %v666 = vsel %vm235, %v658, 0
        %v669 = vsel %vm239, %v664, 0
        %671 = vmatprep.subr.bf16.mxu0 0
        %672 = vmatpush1.bf16.msra.mxu0 %v669
        %673 = vmatprep.subr.bf16.mxu0 0
        %674 = vmatpush1.bf16.msra.mxu0 0
        %675 = vmatprep.subr.bf16.mxu0 0
        %676 = vmatpush1.bf16.msra.mxu0 0
        %677 = vmatprep.subr.bf16.mxu0 0
        %678 = vmatpush1.bf16.msra.mxu0 0
        %679 = vmatprep.subr.bf16.mxu0 0
        %680 = vmatpush1.bf16.msra.mxu0 0
        %681 = vmatprep.subr.bf16.mxu0 0
        %682 = vmatpush1.bf16.msra.mxu0 0
        %683 = vmatprep.subr.bf16.mxu0 0
        %684 = vmatpush1.bf16.msra.mxu0 0
        %685 = vmatprep.subr.bf16.mxu0 0
        %686 = vmatpush1.bf16.msra.mxu0 0
        %687 = vmatprep.subr.bf16.mxu0 0
        %688 = vmatpush1.bf16.msra.mxu0 0
        %689 = vmatprep.subr.bf16.mxu0 0
        %690 = vmatpush1.bf16.msra.mxu0 0
        %691 = vmatprep.subr.bf16.mxu0 0
        %692 = vmatpush1.bf16.msra.mxu0 0
        %693 = vmatprep.subr.bf16.mxu0 0
        %694 = vmatpush1.bf16.msra.mxu0 0
        %695 = vmatprep.subr.bf16.mxu0 0
        %696 = vmatpush1.bf16.msra.mxu0 0
        %697 = vmatprep.subr.bf16.mxu0 0
        %698 = vmatpush1.bf16.msra.mxu0 0
        %699 = vmatprep.subr.bf16.mxu0 0
        %700 = vmatpush1.bf16.msra.mxu0 0
        %701 = vmatprep.subr.bf16.mxu0 0
        %702 = vmatpush1.bf16.msra.mxu0 0
        %703 = vmatprep.mubr.bf16.mxu0 0
        %704 = vmatmul.mubr.bf16.gmra.mrb[0].mxu0 %v666
        %v705 = vpop.f32.mrb[0].mxu0
        %v706 = vadd.f32 0.0, %v705
        %v707 = vpop.f32.mrb[0].mxu0
        %v708 = vpop.f32.mrb[0].mxu0
        %v709 = vadd.f32 0.0, %v708
        %v710 = vpop.f32.mrb[0].mxu0
        %711 = vdwg.mxu0
        %v712 = vadd.f32 %v649, %v706
        %v713 = vadd.f32 %v650, %v709
        %s714 = scalar_lea.vmem %s1, 64
        %v715 = vld [vmem:[%s714] sm:$0xf]
        %v716 = vld [vmem:[%s714 + $0x4] sm:$0xf]
        %v719 = vunpack.c.l.b16 %v715
        %v720 = vunpack.c.l.b16 %v716
        %v721 = vpack.c.b16 %v720, %v719
        %722 = vrot.lane.b32.xlu0 %v227, 64
        %v723 = vpop.permute.xlu0 %722
        %724 = vrot.lane.b32.xlu0 %v228, 64
        %v725 = vpop.permute.xlu0 %724
        %vm726 = vcmask 523264
        %v727 = vsel %vm726, %v723, %v725
        %v729 = vsel %vm235, %v721, 0
        %v732 = vsel %vm239, %v727, 0
        %734 = vmatprep.subr.bf16.mxu0 0
        %735 = vmatpush1.bf16.msra.mxu0 %v732
        %736 = vmatprep.subr.bf16.mxu0 0
        %737 = vmatpush1.bf16.msra.mxu0 0
        %738 = vmatprep.subr.bf16.mxu0 0
        %739 = vmatpush1.bf16.msra.mxu0 0
        %740 = vmatprep.subr.bf16.mxu0 0
        %741 = vmatpush1.bf16.msra.mxu0 0
        %742 = vmatprep.subr.bf16.mxu0 0
        %743 = vmatpush1.bf16.msra.mxu0 0
        %744 = vmatprep.subr.bf16.mxu0 0
        %745 = vmatpush1.bf16.msra.mxu0 0
        %746 = vmatprep.subr.bf16.mxu0 0
        %747 = vmatpush1.bf16.msra.mxu0 0
        %748 = vmatprep.subr.bf16.mxu0 0
        %749 = vmatpush1.bf16.msra.mxu0 0
        %750 = vmatprep.subr.bf16.mxu0 0
        %751 = vmatpush1.bf16.msra.mxu0 0
        %752 = vmatprep.subr.bf16.mxu0 0
        %753 = vmatpush1.bf16.msra.mxu0 0
        %754 = vmatprep.subr.bf16.mxu0 0
        %755 = vmatpush1.bf16.msra.mxu0 0
        %756 = vmatprep.subr.bf16.mxu0 0
        %757 = vmatpush1.bf16.msra.mxu0 0
        %758 = vmatprep.subr.bf16.mxu0 0
        %759 = vmatpush1.bf16.msra.mxu0 0
        %760 = vmatprep.subr.bf16.mxu0 0
        %761 = vmatpush1.bf16.msra.mxu0 0
        %762 = vmatprep.subr.bf16.mxu0 0
        %763 = vmatpush1.bf16.msra.mxu0 0
        %764 = vmatprep.subr.bf16.mxu0 0
        %765 = vmatpush1.bf16.msra.mxu0 0
        %766 = vmatprep.mubr.bf16.mxu0 0
        %767 = vmatmul.mubr.bf16.gmra.mrb[0].mxu0 %v729
        %v768 = vpop.f32.mrb[0].mxu0
        %v769 = vadd.f32 0.0, %v768
        %v770 = vpop.f32.mrb[0].mxu0
        %v771 = vpop.f32.mrb[0].mxu0
        %v772 = vadd.f32 0.0, %v771
        %v773 = vpop.f32.mrb[0].mxu0
        %774 = vdwg.mxu0
        %v775 = vadd.f32 %v712, %v769
        %v776 = vadd.f32 %v713, %v772
        %v777 = vld [vmem:[%s3] sm:$0xff]
        %v778 = vld [vmem:[%s3 + $0x8] sm:$0xff]
        %779 = vadd.xlane.f32.xlu0 %v775
        %v780 = vpop.xlane.xlu0 %779
        %781 = vadd.xlane.f32.xlu0 %v776
        %v782 = vpop.xlane.xlu0 %781
        %v783 = vmul.f32 %v775, %v775
        %v784 = vmul.f32 %v776, %v776
        %785 = vadd.xlane.f32.xlu0 %v783
        %v786 = vpop.xlane.xlu0 %785
        %787 = vadd.xlane.f32.xlu0 %v784
        %v788 = vpop.xlane.xlu0 %787
        %v789 = vmul.f32 %v777, 128.0
        %v790 = vmul.f32 %v778, 128.0
        %v791 = vadd.f32 %v780, %v789
        %v792 = vadd.f32 %v782, %v790
        %v793 = vmul.f32 %v777, 2.0
        %v794 = vmul.f32 %v778, 2.0
        %v795 = vmul.f32 %v793, %v780
        %v796 = vmul.f32 %v794, %v782
        %v797 = vadd.f32 %v786, %v795
        %v798 = vadd.f32 %v788, %v796
        %v799 = vmul.f32 %v777, %v777
        %v800 = vmul.f32 %v778, %v778
        %v801 = vmul.f32 %v799, 128.0
        %v802 = vmul.f32 %v800, 128.0
        %v803 = vadd.f32 %v797, %v801
        %v804 = vadd.f32 %v798, %v802
        %v805 = vld [vmem:[%s2] sm:$0xff]
        %v806 = vld [vmem:[%s2 + $0x8] sm:$0xff]
        %vm807 = vcmask 130048
        %v809 = vsel %vm807, %v805, 0
        %v812 = vsel %vm807, %v806, 0
        %814 = vmatprep.subr.mxu0 0.0
        %815 = vmatpush1.msra.mxu0 %v791
        %816 = vmatprep.subr.mxu0 0.0
        %817 = vmatpush1.msra.mxu0 %v792
        %818 = vmatprep.subr.mxu0 0.0
        %819 = vmatpush1.msra.mxu0 0.0
        %820 = vmatprep.subr.mxu0 0.0
        %821 = vmatpush1.msra.mxu0 0.0
        %822 = vmatprep.subr.mxu0 0.0
        %823 = vmatpush1.msra.mxu0 0.0
        %824 = vmatprep.subr.mxu0 0.0
        %825 = vmatpush1.msra.mxu0 0.0
        %826 = vmatprep.subr.mxu0 0.0
        %827 = vmatpush1.msra.mxu0 0.0
        %828 = vmatprep.subr.mxu0 0.0
        %829 = vmatpush1.msra.mxu0 0.0
        %830 = vmatprep.subr.mxu0 0.0
        %831 = vmatpush1.msra.mxu0 0.0
        %832 = vmatprep.subr.mxu0 0.0
        %833 = vmatpush1.msra.mxu0 0.0
        %834 = vmatprep.subr.mxu0 0.0
        %835 = vmatpush1.msra.mxu0 0.0
        %836 = vmatprep.subr.mxu0 0.0
        %837 = vmatpush1.msra.mxu0 0.0
        %838 = vmatprep.subr.mxu0 0.0
        %839 = vmatpush1.msra.mxu0 0.0
        %840 = vmatprep.subr.mxu0 0.0
        %841 = vmatpush1.msra.mxu0 0.0
        %842 = vmatprep.subr.mxu0 0.0
        %843 = vmatpush1.msra.mxu0 0.0
        %844 = vmatprep.subr.mxu0 0.0
        %845 = vmatpush1.msra.mxu0 0.0
        %846 = vmatprep.subr.mxu0 0.0
        %847 = vmatpush1.msra.mxu0 0.0
        %848 = vmatprep.subr.mxu0 0.0
        %849 = vmatpush1.msra.mxu0 0.0
        %850 = vmatprep.subr.mxu0 0.0
        %851 = vmatpush1.msra.mxu0 0.0
        %852 = vmatprep.subr.mxu0 0.0
        %853 = vmatpush1.msra.mxu0 0.0
        %854 = vmatprep.subr.mxu0 0.0
        %855 = vmatpush1.msra.mxu0 0.0
        %856 = vmatprep.subr.mxu0 0.0
        %857 = vmatpush1.msra.mxu0 0.0
        %858 = vmatprep.subr.mxu0 0.0
        %859 = vmatpush1.msra.mxu0 0.0
        %860 = vmatprep.subr.mxu0 0.0
        %861 = vmatpush1.msra.mxu0 0.0
        %862 = vmatprep.subr.mxu0 0.0
        %863 = vmatpush1.msra.mxu0 0.0
        %864 = vmatprep.subr.mxu0 0.0
        %865 = vmatpush1.msra.mxu0 0.0
        %866 = vmatprep.subr.mxu0 0.0
        %867 = vmatpush1.msra.mxu0 0.0
        %868 = vmatprep.subr.mxu0 0.0
        %869 = vmatpush1.msra.mxu0 0.0
        %870 = vmatprep.subr.mxu0 0.0
        %871 = vmatpush1.msra.mxu0 0.0
        %872 = vmatprep.subr.mxu0 0.0
        %873 = vmatpush1.msra.mxu0 0.0
        %874 = vmatprep.subr.mxu0 0.0
        %875 = vmatpush1.msra.mxu0 0.0
        %876 = vmatprep.subr.mxu0 0.0
        %877 = vmatpush1.msra.mxu0 0.0
        %878 = vmatprep.mubr.f32.mxu0 0.0
        %879 = vmatmul.mubr.f32.gmra.mrb[0].mxu0 %v809
        %v880 = vpop.f32.mrb[0].mxu0
        %v881 = vadd.f32 0.0, %v880
        %v882 = vpop.f32.mrb[0].mxu0
        %883 = vmatprep.mubr.f32.mxu0 0.0
        %884 = vmatmul.mubr.f32.gmra.mrb[0].mxu0 %v812
        %v885 = vpop.f32.mrb[0].mxu0
        %v886 = vadd.f32 0.0, %v885
        %v887 = vpop.f32.mrb[0].mxu0
        %888 = vdwg.mxu0
        %889 = vmatprep.subr.mxu0 0.0
        %890 = vmatpush1.msra.mxu0 %v803
        %891 = vmatprep.subr.mxu0 0.0
        %892 = vmatpush1.msra.mxu0 %v804
        %893 = vmatprep.subr.mxu0 0.0
        %894 = vmatpush1.msra.mxu0 0.0
        %895 = vmatprep.subr.mxu0 0.0
        %896 = vmatpush1.msra.mxu0 0.0
        %897 = vmatprep.subr.mxu0 0.0
        %898 = vmatpush1.msra.mxu0 0.0
        %899 = vmatprep.subr.mxu0 0.0
        %900 = vmatpush1.msra.mxu0 0.0
        %901 = vmatprep.subr.mxu0 0.0
        %902 = vmatpush1.msra.mxu0 0.0
        %903 = vmatprep.subr.mxu0 0.0
        %904 = vmatpush1.msra.mxu0 0.0
        %905 = vmatprep.subr.mxu0 0.0
        %906 = vmatpush1.msra.mxu0 0.0
        %907 = vmatprep.subr.mxu0 0.0
        %908 = vmatpush1.msra.mxu0 0.0
        %909 = vmatprep.subr.mxu0 0.0
        %910 = vmatpush1.msra.mxu0 0.0
        %911 = vmatprep.subr.mxu0 0.0
        %912 = vmatpush1.msra.mxu0 0.0
        %913 = vmatprep.subr.mxu0 0.0
        %914 = vmatpush1.msra.mxu0 0.0
        %915 = vmatprep.subr.mxu0 0.0
        %916 = vmatpush1.msra.mxu0 0.0
        %917 = vmatprep.subr.mxu0 0.0
        %918 = vmatpush1.msra.mxu0 0.0
        %919 = vmatprep.subr.mxu0 0.0
        %920 = vmatpush1.msra.mxu0 0.0
        %921 = vmatprep.subr.mxu0 0.0
        %922 = vmatpush1.msra.mxu0 0.0
        %923 = vmatprep.subr.mxu0 0.0
        %924 = vmatpush1.msra.mxu0 0.0
        %925 = vmatprep.subr.mxu0 0.0
        %926 = vmatpush1.msra.mxu0 0.0
        %927 = vmatprep.subr.mxu0 0.0
        %928 = vmatpush1.msra.mxu0 0.0
        %929 = vmatprep.subr.mxu0 0.0
        %930 = vmatpush1.msra.mxu0 0.0
        %931 = vmatprep.subr.mxu0 0.0
        %932 = vmatpush1.msra.mxu0 0.0
        %933 = vmatprep.subr.mxu0 0.0
        %934 = vmatpush1.msra.mxu0 0.0
        %935 = vmatprep.subr.mxu0 0.0
        %936 = vmatpush1.msra.mxu0 0.0
        %937 = vmatprep.subr.mxu0 0.0
        %938 = vmatpush1.msra.mxu0 0.0
        %939 = vmatprep.subr.mxu0 0.0
        %940 = vmatpush1.msra.mxu0 0.0
        %941 = vmatprep.subr.mxu0 0.0
        %942 = vmatpush1.msra.mxu0 0.0
        %943 = vmatprep.subr.mxu0 0.0
        %944 = vmatpush1.msra.mxu0 0.0
        %945 = vmatprep.subr.mxu0 0.0
        %946 = vmatpush1.msra.mxu0 0.0
        %947 = vmatprep.subr.mxu0 0.0
        %948 = vmatpush1.msra.mxu0 0.0
        %949 = vmatprep.subr.mxu0 0.0
        %950 = vmatpush1.msra.mxu0 0.0
        %951 = vmatprep.subr.mxu0 0.0
        %952 = vmatpush1.msra.mxu0 0.0
        %953 = vmatprep.mubr.f32.mxu0 0.0
        %954 = vmatmul.mubr.f32.gmra.mrb[0].mxu0 %v809
        %v955 = vpop.f32.mrb[0].mxu0
        %v956 = vadd.f32 0.0, %v955
        %v957 = vpop.f32.mrb[0].mxu0
        %958 = vmatprep.mubr.f32.mxu0 0.0
        %959 = vmatmul.mubr.f32.gmra.mrb[0].mxu0 %v812
        %v960 = vpop.f32.mrb[0].mxu0
        %v961 = vadd.f32 0.0, %v960
        %v962 = vpop.f32.mrb[0].mxu0
        %963 = vdwg.mxu0
        %v964 = vmul.f32 %v881, 0.00390625
        %v965 = vmul.f32 %v886, 0.00390625
        %v966 = vmul.f32 %v956, 0.00390625
        %v967 = vmul.f32 %v961, 0.00390625
        %v968 = vmul.f32 %v964, %v964
        %v969 = vmul.f32 %v965, %v965
        %v970 = vsub.f32 %v966, %v968
        %v971 = vsub.f32 %v967, %v969
        %v972 = vmax.f32 %v970, 0.0
        %v973 = vmax.f32 %v971, 0.0
        %v974 = vadd.f32 %v972, 1e-05
        %v975 = vadd.f32 %v973, 1e-05
        %v976 = vrsqrt.pop %v974
        %v977 = vrsqrt.pop %v975
        %980 = vrot.lane.b32.xlu0 %v777, 127
        %v981 = vpop.permute.xlu0 %980
        %982 = vrot.lane.b32.xlu0 %v778, 127
        %v983 = vpop.permute.xlu0 %982
        %v986 = vmul.f32 %v976, %v981
        %v987 = vmul.f32 %v977, %v983
        %v988 = vsub.f32 %v777, %v964
        %v989 = vsub.f32 %v778, %v965
        %v990 = vmul.f32 %v988, %v986
        %v991 = vmul.f32 %v989, %v987
        %992 = vrot.lane.b32.xlu0 %v777, 126
        %v993 = vpop.permute.xlu0 %992
        %994 = vrot.lane.b32.xlu0 %v778, 126
        %v995 = vpop.permute.xlu0 %994
        %v998 = vadd.f32 %v990, %v993
        %v999 = vadd.f32 %v991, %v995
        %1001 = vset.pattern.permute.xlu0 0
        %1002 = vperm.xlu0 %1001, %v986
        %v1003 = vpop.permute.xlu0 %1002
        %1006 = vset.pattern.permute.xlu0 0
        %1007 = vperm.xlu0 %1006, %v987
        %v1008 = vpop.permute.xlu0 %1007
        %v1010 = vmul.f32 %v775, %v1003
        %v1011 = vmul.f32 %v776, %v1008
        %1013 = vset.pattern.permute.xlu0 0
        %1014 = vperm.xlu0 %1013, %v998
        %v1015 = vpop.permute.xlu0 %1014
        %1018 = vset.pattern.permute.xlu0 0
        %1019 = vperm.xlu0 %1018, %v999
        %v1020 = vpop.permute.xlu0 %1019
        %v1022 = vadd.f32 %v1010, %v1015
        %v1023 = vadd.f32 %v1011, %v1020
        %1024 = vst [vmem:[%s188] sm:$0xff] %v1022
        %1025 = vst [vmem:[%s188 + $0x8] sm:$0xff] %v1023
        %s1026 = sand.u32 %s115, 1
        %s1027 = scalar_lea.sflag [#allocation4], %s1026
        %s1028 = sand.u32 %s115, 1
        %s1029 = smul.addr %s1028, 16
        %s1030 = scalar_lea.vmem [#allocation3], %s1029
        // Predicated region
        $region37: #{tpu_custom_call.1} parent=35 // pred_check
          %p1031 = pneg %p125
        $region38: #{tpu_custom_call.1} parent=35 // pred_check_branch
          %1033 = sbr.rel (%p1031) target = $region40
        $region39: #{tpu_custom_call.1} parent=35 // pred_region
          %s1035 = ssub.s32 256, 256
          %1036 = vsyncadd %s1027, %s1035
          %s1037 = smul.addr %s18, 2
          %s1038 = smul.addr %s1037, 128
          %s1039 = scalar_lea.hbm %s4, %s1038
          %s1040 = sshll.u32 %s1030, 4
          %s1041 = int_to_ptr.vmem [resolvable:$true] %s1040
          %1046 = dma.vmem_to_hbm [thread:$0]  %s1041, 256, %s1039, %s1027, 128, 128, 8
        $region40: #{tpu_custom_call.1} parent=35 // pred_fallthru
          _
      $region36: #{tpu_custom_call.1} parent=5 // pred_fallthru
        _
      %p1047 = scmp.le.s32.totalorder 2, %s13
      // Predicated region
      $region41: #{tpu_custom_call.1} parent=5 // pred_check
        %p1048 = pneg %p1047
      $region42: #{tpu_custom_call.1} parent=5 // pred_check_branch
        %1050 = sbr.rel (%p1048) target = $region44
      $region43: #{tpu_custom_call.1} parent=5 // pred_region
        %s1051 = ssub.s32 %s13, 2
        // Predicated region
        $region45: #{tpu_custom_call.1} parent=43 // pred_check
          %p1052 = pneg %p131
        $region46: #{tpu_custom_call.1} parent=43 // pred_check_branch
          %1054 = sbr.rel (%p1052) target = $region48
        $region47: #{tpu_custom_call.1} parent=43 // pred_region
          %s1055 = sand.u32 %s116, 1
          %s1056 = scalar_lea.sflag [#allocation4], %s1055
          %s1057 = sand.u32 %s116, 1
          %s1058 = smul.addr %s1057, 16
          %s1059 = scalar_lea.vmem [#allocation3], %s1058
          %1060 = dma.done %s1056, 256
        $region48: #{tpu_custom_call.1} parent=43 // pred_fallthru
          _
      $region44: #{tpu_custom_call.1} parent=5 // pred_fallthru
        _
    $region6: #{tpu_custom_call.1} parent=1 // loop_footer
      %s17 = sadd.s32 1, %s13
    $region7: #{tpu_custom_call.1} parent=1 // loop_footer_branch
      %12 = sbr.rel target = $region3
    $region8: #{tpu_custom_call.1} parent=1 // loop_exit
      _
    %1061 = vsyncpa [#allocation4], 1
    %s1062 = scalar_lea.sflag [#allocation4], 1
    %1063 = vsyncpa %s1062, 1

</llo_original>
